<compile_context>
chip_gen: v7x
topology: tpu7x:2x2x1
jax: 0.10.0
libtpu: 0.0.40
codegen_flags: <defaults>
</compile_context>

<pallas_src>
import jax
import jax.numpy as jnp
from jax.experimental import pallas as pl
from jax.experimental.pallas import tpu as pltpu


def _norm_kernel(x_ref, scale_ref, bias_ref, o_ref):
    # x_ref: (TR, THW) input dtype; scale_ref/bias_ref: (TR, 1) f32 lane-broadcast.
    # Compute in f32 (in-kernel upcast for uint8/bf16 inputs), cast only on store.
    x = x_ref[...].astype(jnp.float32)
    o_ref[...] = (x * scale_ref[...] + bias_ref[...]).astype(o_ref.dtype)


def _block_byte_target():
    """Per-output-block byte budget, chosen by TPU generation."""
    try:
        kind = jax.devices()[0].device_kind.lower()
    except Exception:
        kind = ""
    if "v7" in kind:
        return 6 << 20   # 3.2 TB/s HBM: bigger tiles to hide per-step overhead
    if "v6" in kind:
        return 4 << 20
    return 2 << 20       # v5e (16 MiB scoped-VMEM default) and unknown chips


def _choose_tiles(nc, hw, in_itemsize, out_itemsize, target_bytes):
    """Pick (row_tile, lane_tile) obeying the (8,128) rule, ~target bytes/block."""
    # Sublane multiple: 8-bit dtypes pack 32 rows per vreg, 16-bit pack 16.
    sub = 32 if in_itemsize == 1 else (16 if in_itemsize == 2 else 8)

    tr0 = nc if nc <= sub else sub
    # Lane tile: prefer the full (dense, unmasked-store) extent, capped so a
    # single sub-row group never blows the budget on its own.
    if hw <= 128:
        thw = hw
    else:
        lane_cap = max(128, (target_bytes // (tr0 * out_itemsize) // 128) * 128)
        thw = min((hw // 128) * 128, lane_cap)

    # Grow the row tile toward the byte budget once thw is fixed (this is what
    # was missing before: small H*W no longer collapses the block to ~8 KiB).
    if nc > sub:
        want_rows = max(1, target_bytes // (thw * out_itemsize))
        tr = min((nc // sub) * sub, max(sub, (want_rows // sub) * sub))
    else:
        tr = nc  # full extent

    # v7x has 2 TensorCores: give a non-trivial problem at least 2 grid steps
    # along a "parallel" axis so both cores get balanced work.
    total_bytes = nc * hw * out_itemsize
    if (pl.cdiv(nc, tr) == 1 and pl.cdiv(hw, thw) == 1
            and nc >= 2 * sub and total_bytes > (512 << 10)):
        tr = max(sub, ((tr // 2) // sub) * sub)

    return tr, thw


def normalization_forward(img, mean, std):
    """(img - mean[:, None, None]) / std[:, None, None] over an NCHW batch.

    Floating inputs keep their dtype; integer (e.g. uint8) inputs produce a
    float32 output, with the cast done inside the kernel.
    """
    N, C, H, W = img.shape
    in_dtype = img.dtype
    out_dtype = in_dtype if jnp.issubdtype(in_dtype, jnp.floating) else jnp.float32

    mean = jnp.asarray(mean, dtype=jnp.float32).reshape(C)
    std = jnp.asarray(std, dtype=jnp.float32).reshape(C)
    scale = 1.0 / std          # keep constants in f32 (no double rounding)
    bias = -mean / std         # x*scale + bias == (x - mean)/std

    nc, hw = N * C, H * W
    x2 = img.reshape(nc, hw)   # contiguous NCHW -> free reshape
    scale2 = jnp.broadcast_to(scale[None, :], (N, C)).reshape(nc, 1)
    bias2 = jnp.broadcast_to(bias[None, :], (N, C)).reshape(nc, 1)

    tr, thw = _choose_tiles(
        nc, hw,
        jnp.dtype(in_dtype).itemsize,
        jnp.dtype(out_dtype).itemsize,
        _block_byte_target(),
    )
    grid = (pl.cdiv(nc, tr), pl.cdiv(hw, thw))  # lane axis innermost

    out2 = pl.pallas_call(
        _norm_kernel,
        out_shape=jax.ShapeDtypeStruct((nc, hw), out_dtype),
        grid_spec=pltpu.PrefetchScalarGridSpec(
            num_scalar_prefetch=0,
            grid=grid,
            in_specs=[
                pl.BlockSpec((tr, thw), lambda r, t: (r, t)),
                pl.BlockSpec((tr, 1), lambda r, t: (r, 0)),
                pl.BlockSpec((tr, 1), lambda r, t: (r, 0)),
            ],
            out_specs=pl.BlockSpec((tr, thw), lambda r, t: (r, t)),
        ),
        compiler_params=pltpu.CompilerParams(
            dimension_semantics=("parallel", "parallel"),
        ),
    )(x2, scale2, bias2)

    # TODO(synk): fuse this normalization into the adjacent producer (uint8 decode)
    # or consumer (first conv / patchify) kernel to eliminate one HBM round-trip.
    return out2.reshape(N, C, H, W)


if __name__ == "__main__":
    key = jax.random.PRNGKey(0)
    N, C, H, W = 2, 4, 16, 16

    # Deterministic "parameters" (the module's __init__ takes mean/std lists).
    mean = jnp.array([0.485, 0.456, 0.406, 0.5], dtype=jnp.float32)  # (C,)
    std = jnp.array([0.229, 0.224, 0.225, 0.25], dtype=jnp.float32)  # (C,)

    img = jax.random.uniform(key, (N, C, H, W), dtype=jnp.float32)

    # float32 path
    out = normalization_forward(img, mean, std)
    out = jax.block_until_ready(out)
    ref = (img - mean.reshape(-1, 1, 1)) / std.reshape(-1, 1, 1)
    assert out.shape == img.shape and out.dtype == img.dtype
    assert jnp.allclose(out, ref, rtol=1e-5, atol=1e-5)

    # bfloat16 path (constants stay f32; FMA in f32; only the store is bf16)
    img_bf16 = img.astype(jnp.bfloat16)
    out_bf16 = jax.block_until_ready(normalization_forward(img_bf16, mean, std))
    assert out_bf16.shape == img.shape and out_bf16.dtype == jnp.bfloat16
    ref_bf16 = (img_bf16.astype(jnp.float32) - mean.reshape(-1, 1, 1)) / std.reshape(-1, 1, 1)
    assert jnp.allclose(out_bf16.astype(jnp.float32), ref_bf16, rtol=3e-2, atol=3e-2)

    print("KERNEL_OK")
</pallas_src>

<mosaic_0001>
module attributes {stable_mosaic.version = 11 : i64} {
  func.func @_norm_kernel(%arg0: i32, %arg1: i32, %arg2: memref<8x256xf32, #tpu.memory_space<vmem>>, %arg3: memref<8x1xf32, #tpu.memory_space<vmem>>, %arg4: memref<8x1xf32, #tpu.memory_space<vmem>>, %arg5: memref<8x256xf32, #tpu.memory_space<vmem>>) attributes {dimension_semantics = [#tpu.dimension_semantics<parallel>, #tpu.dimension_semantics<parallel>], iteration_bounds = array<i64: 1, 1>, scalar_prefetch = 0 : i64, scratch_operands = 0 : i64, tpu.core_type = #tpu.core_type<tc>, window_params = [{transform_indices = @transform_0, window_bounds = array<i64: 8, 256>}, {transform_indices = @transform_1, window_bounds = array<i64: 8, 1>}, {transform_indices = @transform_2, window_bounds = array<i64: 8, 1>}, {transform_indices = @transform_3, window_bounds = array<i64: 8, 256>}]} {
    %c0 = arith.constant 0 : index
    %c0_0 = arith.constant 0 : index
    %0 = vector.load %arg2[%c0, %c0_0] : memref<8x256xf32, #tpu.memory_space<vmem>>, vector<8x256xf32>
    %c0_1 = arith.constant 0 : index
    %c0_2 = arith.constant 0 : index
    %1 = vector.load %arg3[%c0_1, %c0_2] : memref<8x1xf32, #tpu.memory_space<vmem>>, vector<8x1xf32>
    %2 = vector.broadcast %1 : vector<8x1xf32> to vector<8x256xf32>
    %3 = arith.mulf %0, %2 : vector<8x256xf32>
    %c0_3 = arith.constant 0 : index
    %c0_4 = arith.constant 0 : index
    %4 = vector.load %arg4[%c0_3, %c0_4] : memref<8x1xf32, #tpu.memory_space<vmem>>, vector<8x1xf32>
    %5 = vector.broadcast %4 : vector<8x1xf32> to vector<8x256xf32>
    %6 = arith.addf %3, %5 : vector<8x256xf32>
    %c0_5 = arith.constant 0 : index
    %c0_6 = arith.constant 0 : index
    %7 = vector.load %arg5[%c0_5, %c0_6] : memref<8x256xf32, #tpu.memory_space<vmem>>, vector<8x256xf32>
    tpu.vector_store %arg5[%c0_5, %c0_6], %6 {strides = array<i32>} : memref<8x256xf32, #tpu.memory_space<vmem>>, vector<8x256xf32>,
    return
  }
  func.func @transform_0(%arg0: i32, %arg1: i32) -> (i32, i32) {
    %c0_i32 = arith.constant 0 : i32
    return %arg0, %arg1 : i32, i32
  }
  func.func @transform_1(%arg0: i32, %arg1: i32) -> (i32, i32) {
    %c0_i32 = arith.constant 0 : i32
    %c0_i32_0 = arith.constant 0 : i32
    return %arg0, %c0_i32 : i32, i32
  }
  func.func @transform_2(%arg0: i32, %arg1: i32) -> (i32, i32) {
    %c0_i32 = arith.constant 0 : i32
    %c0_i32_0 = arith.constant 0 : i32
    return %arg0, %c0_i32 : i32, i32
  }
  func.func @transform_3(%arg0: i32, %arg1: i32) -> (i32, i32) {
    %c0_i32 = arith.constant 0 : i32
    return %arg0, %arg1 : i32, i32
  }
}

</mosaic_0001>

<llo_original>
// kernel: tpu_custom_call.1
$region0: #{tpu_custom_call.1}
  #allocation0 [shape = 'u32[]', space=smem, size = 0x4, offset = 0x4, fixed_abs, tag = 'smem constant byte address 0x4 - core index']
  #allocation1 [shape = 'u32[144,128]{1,0:T(1,128)}', space=vmem, size = 0x12000, scoped, tag = 'internal scratch']
  %s0 = inlined_call_operand.vmem [shape: f32[8,256], index: 0, kind: input, shape index: {}]
  %s1 = inlined_call_operand.vmem [shape: f32[8,1], index: 1, kind: input, shape index: {}]
  %s2 = inlined_call_operand.vmem [shape: f32[8,1], index: 2, kind: input, shape index: {}]
  %s3 = inlined_call_operand.hbm [shape: f32[8,256], index: 3, kind: output, shape index: {}]
  %s4 = sld [smem:[#allocation0]]
  $region22: #{tpu_custom_call.1} parent=0
    _
  %s6 = ssub.s32 1, %s4
  %s7 = scalar_select 0, %s6, %s4
  $region1: #{tpu_custom_call.1} parent=0
    #allocation2 [shape = 'u8[8192]{0}', space=vmem, size = 0x2000, scoped, tag = 'output window, operand 0, single buffered']
    #allocation3 [shape = 's32[1]{0}', space=sflag, size = 0x4, scoped, tag = 'scoped memory for tpu_custom_call.1']
    %8 = vsyncpa [#allocation3], 0
    // Predicated region
    $region2: #{tpu_custom_call.1} parent=1 // pred_check
      _
    $region3: #{tpu_custom_call.1} parent=1 // pred_check_branch
      %10 = sbr.rel (0) target = $region5
    $region4: #{tpu_custom_call.1} parent=1 // pred_region
      _
    $region5: #{tpu_custom_call.1} parent=1 // pred_fallthru
      _
    // Predicated region
    $region6: #{tpu_custom_call.1} parent=1 // pred_check
      _
    $region7: #{tpu_custom_call.1} parent=1 // pred_check_branch
      %12 = sbr.rel (0) target = $region9
    $region8: #{tpu_custom_call.1} parent=1 // pred_region
      _
    $region9: #{tpu_custom_call.1} parent=1 // pred_fallthru
      _
    // Predicated region
    $region10: #{tpu_custom_call.1} parent=1 // pred_check
      _
    $region11: #{tpu_custom_call.1} parent=1 // pred_check_branch
      %14 = sbr.rel (0) target = $region13
    $region12: #{tpu_custom_call.1} parent=1 // pred_region
      _
    $region13: #{tpu_custom_call.1} parent=1 // pred_fallthru
      _
    %v15 = vld [vmem:[%s0] sm:$0xff]
    %v16 = vld [vmem:[%s0 + $0x8] sm:$0xff]
    %v17 = vld [vmem:[%s1] sm:$0xff]
    %19 = vset.pattern.permute.xlu0 0
    %20 = vperm.xlu0 %19, %v17
    %v21 = vpop.permute.xlu0 %20
    %v23 = vmul.f32 %v15, %v21
    %v24 = vmul.f32 %v16, %v21
    %v25 = vld [vmem:[%s2] sm:$0xff]
    %27 = vset.pattern.permute.xlu0 0
    %28 = vperm.xlu0 %27, %v25
    %v29 = vpop.permute.xlu0 %28
    %v31 = vadd.f32 %v23, %v29
    %v32 = vadd.f32 %v24, %v29
    %33 = vst [vmem:[#allocation2] sm:$0xff] %v31
    %34 = vst [vmem:[#allocation2 + $0x8] sm:$0xff] %v32
    // Predicated region
    $region14: #{tpu_custom_call.1} parent=1 // pred_check
      _
    $region15: #{tpu_custom_call.1} parent=1 // pred_check_branch
      %36 = sbr.rel (0) target = $region17
    $region16: #{tpu_custom_call.1} parent=1 // pred_region
      %s38 = ssub.s32 256, 256
      %39 = vsyncadd [#allocation3], %s38
      %s41 = sshll.u32 [#allocation2], 4
      %s42 = int_to_ptr.vmem [resolvable:$true] %s41
      %44 = dma.vmem_to_hbm [thread:$0]  %s42, 256, %s3, [#allocation3]
    $region17: #{tpu_custom_call.1} parent=1 // pred_fallthru
      _
    // Predicated region
    $region18: #{tpu_custom_call.1} parent=1 // pred_check
      _
    $region19: #{tpu_custom_call.1} parent=1 // pred_check_branch
      %46 = sbr.rel (0) target = $region21
    $region20: #{tpu_custom_call.1} parent=1 // pred_region
      %47 = dma.done [#allocation3], 256
    $region21: #{tpu_custom_call.1} parent=1 // pred_fallthru
      _
    %48 = vsyncpa [#allocation3], 1

</llo_original>
